<compile_context>
chip_gen: v7x
topology: tpu7x:2x2x1
jax: 0.10.0
libtpu: 0.0.40
codegen_flags: <defaults>
</compile_context>

<pallas_src>
import functools

import jax
import jax.numpy as jnp
from jax.experimental import pallas as pl
from jax.experimental.pallas import tpu as pltpu

_LANES = 128
_SUBLANES = 8
_NUM_CORES = 2           # leading "parallel" grid axis; 2 TCs on v7x, serial elsewhere
# 1024 rows x 128 lanes x 4 B = 512 KiB per pipeline buffer -> 2 inputs x
# 2 buffers ~= 2 MiB VMEM: safely under v5e's 16 MiB scoped-VMEM default and
# in the 512-1024-row regime that hits ~85% of the HBM roofline.
_MAX_BLOCK_ROWS = 1024


# ----------------------------- Pallas kernels ------------------------------ #
def _l1_sum_kernel(a_ref, b_ref, acc_ref):
    """Streaming sum of |a - b| into a per-core (8, 128) resident accumulator."""
    i = pl.program_id(1)

    @pl.when(i == 0)
    def _():
        acc_ref[...] = jnp.zeros_like(acc_ref)

    # Upcast in-kernel: HBM traffic stays at the native dtype width.
    a = a_ref[...].astype(jnp.float32)
    b = b_ref[...].astype(jnp.float32)
    part = jnp.abs(a - b)
    # Sublane partial reduction (pure vreg adds); single cross-lane reduce is
    # deferred to the wrapper.
    acc_ref[...] += jnp.sum(part.reshape(-1, _SUBLANES, _LANES), axis=0)


def _bce_sum_kernel(p_ref, t_ref, acc_ref):
    """Streaming sum of BCELoss terms (torch semantics: logs clamped at -100)."""
    i = pl.program_id(1)

    @pl.when(i == 0)
    def _():
        acc_ref[...] = jnp.zeros_like(acc_ref)

    p = p_ref[...].astype(jnp.float32)
    t = t_ref[...].astype(jnp.float32)
    # NOTE: if the producer ever emits logits, a BCE-with-logits (single
    # softplus) form would halve EUP work on v7x; the module spec takes
    # probabilities, so keep the two-log BCELoss form.
    log_p = jnp.maximum(jnp.log(p), -100.0)
    log_1mp = jnp.maximum(jnp.log(1.0 - p), -100.0)
    # -(t*log_p + (1-t)*log_1mp) == -(log_1mp + t*(log_p - log_1mp))
    # Zero-padded tail (p=0, t=0): -(0 + 0*(-100)) == 0, so padding is inert.
    part = -(log_1mp + t * (log_p - log_1mp))
    acc_ref[...] += jnp.sum(part.reshape(-1, _SUBLANES, _LANES), axis=0)


# --------------------------- wrapper helpers -------------------------------- #
def _pick_block_rows(n_elems):
    """Largest multiple-of-8 row tile (capped) aiming for >= 1 tile per core."""
    rows = pl.cdiv(n_elems, _LANES)
    per_core = pl.cdiv(rows, _NUM_CORES)
    rows8 = ((per_core + _SUBLANES - 1) // _SUBLANES) * _SUBLANES
    return min(_MAX_BLOCK_ROWS, max(_SUBLANES, rows8))


def _prep_slab(x, block_rows):
    """Flatten to (num_cores*tiles_per_core*block_rows, 128), zero-pad tail."""
    flat = x.reshape(-1)
    n = flat.shape[0]
    tile_elems = block_rows * _LANES
    tiles_per_core = pl.cdiv(pl.cdiv(n, tile_elems), _NUM_CORES)
    total = _NUM_CORES * tiles_per_core * tile_elems
    if total != n:
        flat = jnp.pad(flat, (0, total - n))
    return flat.reshape(-1, _LANES), tiles_per_core


def _pallas_pair_sum(kernel, a, b):
    """Stream (a, b) once from HBM; return the f32 scalar sum of kernel(a, b)."""
    assert a.shape == b.shape
    block_rows = _pick_block_rows(a.size)
    a2, tiles_per_core = _prep_slab(a, block_rows)
    b2, _ = _prep_slab(b, block_rows)

    def in_map(c, i):
        return (c * tiles_per_core + i, 0)

    partials = pl.pallas_call(
        kernel,
        out_shape=jax.ShapeDtypeStruct((_NUM_CORES * _SUBLANES, _LANES),
                                       jnp.float32),
        grid_spec=pltpu.PrefetchScalarGridSpec(
            num_scalar_prefetch=0,
            grid=(_NUM_CORES, tiles_per_core),
            in_specs=[
                pl.BlockSpec((block_rows, _LANES), in_map),
                pl.BlockSpec((block_rows, _LANES), in_map),
            ],
            # Per-core (8,128) output block, resident across the reduction axis.
            out_specs=pl.BlockSpec((_SUBLANES, _LANES), lambda c, i: (c, 0)),
        ),
        compiler_params=pltpu.CompilerParams(
            dimension_semantics=("parallel", "arbitrary")),
    )(a2, b2)
    # Tiny (16, 128) cross-lane/core reduce done once, outside the kernel.
    return jnp.sum(partials)


# --------------------------- Loss module wrapper ---------------------------- #
@functools.partial(jax.jit, static_argnames=("mask_generator",))
def loss_backbone_train_forward(out_x, out_m, gt_x, gt_m, *, mask_generator):
    """JAX/Pallas equivalent of Loss_backbone_train.forward (gt_x provided)."""
    loss_recon = jnp.float32(0.0)
    loss_prior = jnp.float32(0.0)

    # L1Loss (mean) over the reconstruction, streamed once from HBM.
    loss_pixl_x = (_pallas_pair_sum(_l1_sum_kernel, out_x, gt_x)
                   / jnp.float32(out_x.size))

    # Sum of per-head BCELoss means; each head is streamed directly with its
    # own block size (no stack / concat / dtype-promotion copies in HBM).
    loss_pixl_m = jnp.float32(0.0)
    for i in range(mask_generator):
        head_sum = _pallas_pair_sum(_bce_sum_kernel, out_m[i], gt_m[i])
        loss_pixl_m = loss_pixl_m + head_sum / jnp.float32(out_m[i].size)

    total_loss = loss_pixl_x + 1.0 * loss_pixl_m
    return {
        "total_loss": total_loss,
        "recon_loss": loss_recon,
        "prior_loss": loss_prior,
        "pixel_loss_x": loss_pixl_x,
        "pixel_loss_m": loss_pixl_m,
    }


def loss_backbone_train_forward_no_gt():
    """Branch where gt_x is None: only recon_loss (== 0) is returned."""
    return {"recon_loss": jnp.float32(0.0)}


# ----------------------------------- main ----------------------------------- #
if __name__ == "__main__":
    # Deterministic synthetic config / inputs (module __init__ params alpha,
    # beta, rate, scales are unused by forward; mask_generator is used).
    mask_generator = 2

    key = jax.random.PRNGKey(0)
    k1, k2, k3, k4 = jax.random.split(key, 4)

    # out_x / gt_x: NCHW (2, 4, 16, 16)
    out_x = jax.random.normal(k1, (2, 4, 16, 16), dtype=jnp.float32)
    gt_x = jax.random.normal(k2, (2, 4, 16, 16), dtype=jnp.float32)

    # out_m[i]: probabilities in (0,1) (PyTorch BCELoss expects sigmoid output);
    # gt_m[i]: targets in [0,1]. Shape (2, 1, 16, 16).
    mk_keys = jax.random.split(k3, mask_generator)
    tk_keys = jax.random.split(k4, mask_generator)
    out_m = [
        jax.nn.sigmoid(jax.random.normal(mk_keys[i], (2, 1, 16, 16), jnp.float32))
        for i in range(mask_generator)
    ]
    gt_m = [
        jax.random.uniform(tk_keys[i], (2, 1, 16, 16), jnp.float32)
        for i in range(mask_generator)
    ]

    # Host-side equivalent of `assert gt_m[i].min() >= 0 and gt_m[i].max() <= 1`.
    for i in range(mask_generator):
        gm = jax.device_get(gt_m[i])
        assert gm.min() >= 0.0 and gm.max() <= 1.0

    losses = loss_backbone_train_forward(
        out_x, out_m, gt_x, gt_m, mask_generator=mask_generator
    )
    losses = jax.block_until_ready(losses)

    # Sanity check against a pure-JAX reference.
    ref_l1 = jnp.mean(jnp.abs(out_x - gt_x))
    ref_bce = sum(
        jnp.mean(
            -(
                gt_m[i] * jnp.maximum(jnp.log(out_m[i]), -100.0)
                + (1.0 - gt_m[i]) * jnp.maximum(jnp.log(1.0 - out_m[i]), -100.0)
            )
        )
        for i in range(mask_generator)
    )
    ref_total = ref_l1 + ref_bce
    assert jnp.allclose(losses["pixel_loss_x"], ref_l1, rtol=1e-5, atol=1e-5)
    assert jnp.allclose(losses["pixel_loss_m"], ref_bce, rtol=1e-5, atol=1e-5)
    assert jnp.allclose(losses["total_loss"], ref_total, rtol=1e-5, atol=1e-5)

    print("KERNEL_OK")
</pallas_src>

<mosaic_0001>
module attributes {stable_mosaic.version = 11 : i64} {
  func.func @_bce_sum_kernel(%arg0: i32, %arg1: i32, %arg2: memref<8x128xf32, #tpu.memory_space<vmem>>, %arg3: memref<8x128xf32, #tpu.memory_space<vmem>>, %arg4: memref<8x128xf32, #tpu.memory_space<vmem>>) attributes {dimension_semantics = [#tpu.dimension_semantics<parallel>, #tpu.dimension_semantics<arbitrary>], iteration_bounds = array<i64: 2, 1>, scalar_prefetch = 0 : i64, scratch_operands = 0 : i64, tpu.core_type = #tpu.core_type<tc>, window_params = [{transform_indices = @transform_0, window_bounds = array<i64: 8, 128>}, {transform_indices = @transform_1, window_bounds = array<i64: 8, 128>}, {transform_indices = @transform_2, window_bounds = array<i64: 8, 128>}]} {
    %c0_i32 = arith.constant 0 : i32
    %0 = arith.cmpi eq, %arg1, %c0_i32 : i32
    %1 = arith.extui %0 : i1 to i32
    %c0_i32_0 = arith.constant 0 : i32
    %2 = arith.cmpi ne, %1, %c0_i32_0 : i32
    scf.if %2 {
      %cst_12 = arith.constant 0.000000e+00 : f32
      %23 = vector.broadcast %cst_12 : f32 to vector<8x128xf32>
      %c0_13 = arith.constant 0 : index
      %c0_14 = arith.constant 0 : index
      %24 = vector.load %arg4[%c0_13, %c0_14] : memref<8x128xf32, #tpu.memory_space<vmem>>, vector<8x128xf32>
      tpu.vector_store %arg4[%c0_13, %c0_14], %23 {strides = array<i32>} : memref<8x128xf32, #tpu.memory_space<vmem>>, vector<8x128xf32>,
    } else {
    }
    %c0 = arith.constant 0 : index
    %c0_1 = arith.constant 0 : index
    %3 = vector.load %arg2[%c0, %c0_1] : memref<8x128xf32, #tpu.memory_space<vmem>>, vector<8x128xf32>
    %c0_2 = arith.constant 0 : index
    %c0_3 = arith.constant 0 : index
    %4 = vector.load %arg3[%c0_2, %c0_3] : memref<8x128xf32, #tpu.memory_space<vmem>>, vector<8x128xf32>
    %5 = math.log %3 : vector<8x128xf32>
    %cst = arith.constant -1.000000e+02 : f32
    %6 = vector.broadcast %cst : f32 to vector<8x128xf32>
    %7 = arith.maximumf %5, %6 : vector<8x128xf32>
    %cst_4 = arith.constant 1.000000e+00 : f32
    %8 = vector.broadcast %cst_4 : f32 to vector<8x128xf32>
    %9 = arith.subf %8, %3 : vector<8x128xf32>
    %10 = math.log %9 : vector<8x128xf32>
    %cst_5 = arith.constant -1.000000e+02 : f32
    %11 = vector.broadcast %cst_5 : f32 to vector<8x128xf32>
    %12 = arith.maximumf %10, %11 : vector<8x128xf32>
    %13 = arith.subf %7, %12 : vector<8x128xf32>
    %14 = arith.mulf %4, %13 : vector<8x128xf32>
    %15 = arith.addf %12, %14 : vector<8x128xf32>
    %cst_6 = arith.constant 0.000000e+00 : f32
    %16 = vector.broadcast %cst_6 : f32 to vector<8x128xf32>
    %17 = arith.subf %16, %15 : vector<8x128xf32>
    %c0_7 = arith.constant 0 : index
    %c0_8 = arith.constant 0 : index
    %18 = vector.load %arg4[%c0_7, %c0_8] : memref<8x128xf32, #tpu.memory_space<vmem>>, vector<8x128xf32>
    %19 = vector.shape_cast %17 : vector<8x128xf32> to vector<1x8x128xf32>
    %cst_9 = arith.constant dense<0.000000e+00> : vector<8x128xf32>
    %20 = vector.multi_reduction <add>, %19, %cst_9 [0] : vector<1x8x128xf32> to vector<8x128xf32>
    %21 = arith.addf %18, %20 : vector<8x128xf32>
    %c0_10 = arith.constant 0 : index
    %c0_11 = arith.constant 0 : index
    %22 = vector.load %arg4[%c0_10, %c0_11] : memref<8x128xf32, #tpu.memory_space<vmem>>, vector<8x128xf32>
    tpu.vector_store %arg4[%c0_10, %c0_11], %21 {strides = array<i32>} : memref<8x128xf32, #tpu.memory_space<vmem>>, vector<8x128xf32>,
    return
  }
  func.func @transform_0(%arg0: i32, %arg1: i32) -> (i32, i32) {
    %c1_i32 = arith.constant 1 : i32
    %0 = arith.muli %arg0, %c1_i32 : i32
    %1 = arith.addi %0, %arg1 : i32
    %c0_i32 = arith.constant 0 : i32
    %c0_i32_0 = arith.constant 0 : i32
    return %1, %c0_i32 : i32, i32
  }
  func.func @transform_1(%arg0: i32, %arg1: i32) -> (i32, i32) {
    %c1_i32 = arith.constant 1 : i32
    %0 = arith.muli %arg0, %c1_i32 : i32
    %1 = arith.addi %0, %arg1 : i32
    %c0_i32 = arith.constant 0 : i32
    %c0_i32_0 = arith.constant 0 : i32
    return %1, %c0_i32 : i32, i32
  }
  func.func @transform_2(%arg0: i32, %arg1: i32) -> (i32, i32) {
    %c0_i32 = arith.constant 0 : i32
    %c0_i32_0 = arith.constant 0 : i32
    return %arg0, %c0_i32 : i32, i32
  }
}

module attributes {stable_mosaic.version = 11 : i64} {
  func.func @_l1_sum_kernel(%arg0: i32, %arg1: i32, %arg2: memref<8x128xf32, #tpu.memory_space<vmem>>, %arg3: memref<8x128xf32, #tpu.memory_space<vmem>>, %arg4: memref<8x128xf32, #tpu.memory_space<vmem>>) attributes {dimension_semantics = [#tpu.dimension_semantics<parallel>, #tpu.dimension_semantics<arbitrary>], iteration_bounds = array<i64: 2, 1>, scalar_prefetch = 0 : i64, scratch_operands = 0 : i64, tpu.core_type = #tpu.core_type<tc>, window_params = [{transform_indices = @transform_0, window_bounds = array<i64: 8, 128>}, {transform_indices = @transform_1, window_bounds = array<i64: 8, 128>}, {transform_indices = @transform_2, window_bounds = array<i64: 8, 128>}]} {
    %c0_i32 = arith.constant 0 : i32
    %0 = arith.cmpi eq, %arg1, %c0_i32 : i32
    %1 = arith.extui %0 : i1 to i32
    %c0_i32_0 = arith.constant 0 : i32
    %2 = arith.cmpi ne, %1, %c0_i32_0 : i32
    scf.if %2 {
      %cst_8 = arith.constant 0.000000e+00 : f32
      %12 = vector.broadcast %cst_8 : f32 to vector<8x128xf32>
      %c0_9 = arith.constant 0 : index
      %c0_10 = arith.constant 0 : index
      %13 = vector.load %arg4[%c0_9, %c0_10] : memref<8x128xf32, #tpu.memory_space<vmem>>, vector<8x128xf32>
      tpu.vector_store %arg4[%c0_9, %c0_10], %12 {strides = array<i32>} : memref<8x128xf32, #tpu.memory_space<vmem>>, vector<8x128xf32>,
    } else {
    }
    %c0 = arith.constant 0 : index
    %c0_1 = arith.constant 0 : index
    %3 = vector.load %arg2[%c0, %c0_1] : memref<8x128xf32, #tpu.memory_space<vmem>>, vector<8x128xf32>
    %c0_2 = arith.constant 0 : index
    %c0_3 = arith.constant 0 : index
    %4 = vector.load %arg3[%c0_2, %c0_3] : memref<8x128xf32, #tpu.memory_space<vmem>>, vector<8x128xf32>
    %5 = arith.subf %3, %4 : vector<8x128xf32>
    %6 = math.absf %5 : vector<8x128xf32>
    %c0_4 = arith.constant 0 : index
    %c0_5 = arith.constant 0 : index
    %7 = vector.load %arg4[%c0_4, %c0_5] : memref<8x128xf32, #tpu.memory_space<vmem>>, vector<8x128xf32>
    %8 = vector.shape_cast %6 : vector<8x128xf32> to vector<1x8x128xf32>
    %cst = arith.constant dense<0.000000e+00> : vector<8x128xf32>
    %9 = vector.multi_reduction <add>, %8, %cst [0] : vector<1x8x128xf32> to vector<8x128xf32>
    %10 = arith.addf %7, %9 : vector<8x128xf32>
    %c0_6 = arith.constant 0 : index
    %c0_7 = arith.constant 0 : index
    %11 = vector.load %arg4[%c0_6, %c0_7] : memref<8x128xf32, #tpu.memory_space<vmem>>, vector<8x128xf32>
    tpu.vector_store %arg4[%c0_6, %c0_7], %10 {strides = array<i32>} : memref<8x128xf32, #tpu.memory_space<vmem>>, vector<8x128xf32>,
    return
  }
  func.func @transform_0(%arg0: i32, %arg1: i32) -> (i32, i32) {
    %c1_i32 = arith.constant 1 : i32
    %0 = arith.muli %arg0, %c1_i32 : i32
    %1 = arith.addi %0, %arg1 : i32
    %c0_i32 = arith.constant 0 : i32
    %c0_i32_0 = arith.constant 0 : i32
    return %1, %c0_i32 : i32, i32
  }
  func.func @transform_1(%arg0: i32, %arg1: i32) -> (i32, i32) {
    %c1_i32 = arith.constant 1 : i32
    %0 = arith.muli %arg0, %c1_i32 : i32
    %1 = arith.addi %0, %arg1 : i32
    %c0_i32 = arith.constant 0 : i32
    %c0_i32_0 = arith.constant 0 : i32
    return %1, %c0_i32 : i32, i32
  }
  func.func @transform_2(%arg0: i32, %arg1: i32) -> (i32, i32) {
    %c0_i32 = arith.constant 0 : i32
    %c0_i32_0 = arith.constant 0 : i32
    return %arg0, %c0_i32 : i32, i32
  }
}

</mosaic_0001>

<llo_original>
// kernel: loss_backbone_train_forward.5
$region0: #{loss_backbone_train_forward.5}
  #allocation0 [shape = 'u32[]', space=smem, size = 0x4, offset = 0x4, fixed_abs, tag = 'smem constant byte address 0x4 - core index']
  #allocation1 [shape = 'u32[144,128]{1,0:T(1,128)}', space=vmem, size = 0x12000, scoped, tag = 'internal scratch']
  %s0 = inlined_call_operand.vmem [shape: f32[16,128], index: 0, kind: input, shape index: {}]
  %s1 = inlined_call_operand.vmem [shape: f32[16,128], index: 1, kind: input, shape index: {}]
  %s2 = inlined_call_operand.vmem [shape: f32[16,128], index: 2, kind: output, shape index: {}]
  %s3 = sld [smem:[#allocation0]]
  $region45: #{loss_backbone_train_forward.5} parent=0
    _
  %s5 = ssub.s32 1, %s3
  %s6 = scalar_select 0, %s5, %s3
  loop: start=0, step=1, limit=4
  $region2: #{loss_backbone_train_forward.5} parent=0 // loop_pre_header
    _
  $region3: #{loss_backbone_train_forward.5} parent=0 // loop_header
    %s8 = sphi 0, %s12
    %p9 = scmp.ge.s32.totalorder %s8, 4
    %s15 = sphi 0, %s27
    %s16 = sphi 0, %s23
    %s17 = sphi 0, %s15
    %s18 = sphi 0, %s16
    %s19 = sphi 0, %s17
    %s20 = sphi 0, %s18
    %s32 = sphi 0, %s34
    %s35 = sphi 0, %s32
    %s36 = sphi 0, %s35
    %s52 = sphi 0, %s36
    %s60 = sphi 0, %s62
    %s63 = sphi 0, %s60
    %s64 = sphi 0, %s63
    %s80 = sphi 0, %s64
    %s86 = sphi 0, %s88
    %s89 = sphi 0, %s86
    %s90 = sphi 0, %s89
    %s106 = sphi 0, %s90
  $region4: #{loss_backbone_train_forward.5} parent=0 // loop_header_branch
    %11 = sbr.rel (%p9) target = $region8
  $region5: #{loss_backbone_train_forward.5} parent=0 // loop_body
    %s13 = ssub.s32 %s8, 1
    %s14 = ssub.s32 %s8, 2
    %s21 = sadd.s32 1, %s16
    %p22 = scmp.ge.s32.totalorder %s21, 1
    %s23 = scalar_select %p22, 0, %s21
    %s24 = sadd.s32 1, %s15
    %s25 = scalar_select %p22, %s24, %s15
    %p26 = scmp.ge.s32.totalorder %s25, 2
    %s27 = scalar_select %p26, 0, %s25
    %s28 = sadd.s32 %s15, %s16
    %s29 = sadd.s32 %s27, %s23
    %s30 = ssub.s32 %s28, %s29
    %p31 = scmp.eq.s32.totalorder %s30, 0
    %s33 = sadd.s32 %s32, 1
    %s34 = scalar_select %p31, %s32, %s33
    %p37 = pneg %p31
    %p38 = scmp.eq.s32.totalorder %s8, 1
    %p39 = por %p37, %p38
    %p40 = scmp.ne.s32.totalorder %s32, %s35
    %p41 = scmp.eq.s32.totalorder %s8, 0
    %p42 = por %p40, %p41
    %p43 = scmp.ne.s32.totalorder %s32, %s35
    %p44 = scmp.eq.s32.totalorder %s13, 1
    %p45 = por %p43, %p44
    %p46 = scmp.ne.s32.totalorder %s35, %s36
    %p47 = scmp.eq.s32.totalorder %s13, 0
    %p48 = por %p46, %p47
    %p49 = scmp.ne.s32.totalorder %s35, %s36
    %p50 = scmp.eq.s32.totalorder %s14, 1
    %p51 = por %p49, %p50
    %p53 = scmp.ne.s32.totalorder %s36, %s52
    %p54 = scmp.eq.s32.totalorder %s14, 0
    %p55 = por %p53, %p54
    %s56 = sadd.s32 %s15, %s16
    %s57 = sadd.s32 %s27, %s23
    %s58 = ssub.s32 %s56, %s57
    %p59 = scmp.eq.s32.totalorder %s58, 0
    %s61 = sadd.s32 %s60, 1
    %s62 = scalar_select %p59, %s60, %s61
    %p65 = pneg %p59
    %p66 = scmp.eq.s32.totalorder %s8, 1
    %p67 = por %p65, %p66
    %p68 = scmp.ne.s32.totalorder %s60, %s63
    %p69 = scmp.eq.s32.totalorder %s8, 0
    %p70 = por %p68, %p69
    %p71 = scmp.ne.s32.totalorder %s60, %s63
    %p72 = scmp.eq.s32.totalorder %s13, 1
    %p73 = por %p71, %p72
    %p74 = scmp.ne.s32.totalorder %s63, %s64
    %p75 = scmp.eq.s32.totalorder %s13, 0
    %p76 = por %p74, %p75
    %p77 = scmp.ne.s32.totalorder %s63, %s64
    %p78 = scmp.eq.s32.totalorder %s14, 1
    %p79 = por %p77, %p78
    %p81 = scmp.ne.s32.totalorder %s64, %s80
    %p82 = scmp.eq.s32.totalorder %s14, 0
    %p83 = por %p81, %p82
    %s84 = ssub.s32 %s15, %s27
    %p85 = scmp.eq.s32.totalorder %s84, 0
    %s87 = sadd.s32 %s86, 1
    %s88 = scalar_select %p85, %s86, %s87
    %p91 = pneg %p85
    %p92 = scmp.eq.s32.totalorder %s8, 1
    %p93 = por %p91, %p92
    %p94 = scmp.ne.s32.totalorder %s86, %s89
    %p95 = scmp.eq.s32.totalorder %s8, 0
    %p96 = por %p94, %p95
    %p97 = scmp.ne.s32.totalorder %s86, %s89
    %p98 = scmp.eq.s32.totalorder %s13, 1
    %p99 = por %p97, %p98
    %p100 = scmp.ne.s32.totalorder %s89, %s90
    %p101 = scmp.eq.s32.totalorder %s13, 0
    %p102 = por %p100, %p101
    %p103 = scmp.ne.s32.totalorder %s89, %s90
    %p104 = scmp.eq.s32.totalorder %s14, 1
    %p105 = por %p103, %p104
    %p107 = scmp.ne.s32.totalorder %s90, %s106
    %p108 = scmp.eq.s32.totalorder %s14, 0
    %p109 = por %p107, %p108
    %p110 = scmp.le.s32.totalorder 1, %s8
    %p111 = scmp.lt.s32.totalorder %s8, 3
    %p112 = pnand %p110, %p111
    %p113 = pneg %p112
    // Predicated region
    $region9: #{loss_backbone_train_forward.5} parent=5 // pred_check
      _
    $region10: #{loss_backbone_train_forward.5} parent=5 // pred_check_branch
      %115 = sbr.rel (%p112) target = $region12
    $region11: #{loss_backbone_train_forward.5} parent=5 // pred_region
      %s116 = ssub.s32 %s8, 1
    $region12: #{loss_backbone_train_forward.5} parent=5 // pred_fallthru
      _
    %p117 = scmp.lt.s32.totalorder %s8, 2
    // Predicated region
    $region13: #{loss_backbone_train_forward.5} parent=5 // pred_check
      %p118 = pneg %p117
    $region14: #{loss_backbone_train_forward.5} parent=5 // pred_check_branch
      %120 = sbr.rel (%p118) target = $region16
    $region15: #{loss_backbone_train_forward.5} parent=5 // pred_region
      // Predicated region
      $region17: #{loss_backbone_train_forward.5} parent=15 // pred_check
        %p121 = pneg %p42
      $region18: #{loss_backbone_train_forward.5} parent=15 // pred_check_branch
        %123 = sbr.rel (%p121) target = $region20
      $region19: #{loss_backbone_train_forward.5} parent=15 // pred_region
        %s124 = sadd.s32 %s15, %s16
        %p125 = scmp.lt.s32.totalorder %s124, 1
        %s126 = scalar_select %p125, %s124, 1
        %s127 = smul.addr %s126, 8
        %s128 = scalar_lea.vmem %s0, %s127
        %s129 = sadd.s32 %s15, %s16
      $region20: #{loss_backbone_train_forward.5} parent=15 // pred_fallthru
        _
      // Predicated region
      $region21: #{loss_backbone_train_forward.5} parent=15 // pred_check
        %p130 = pneg %p70
      $region22: #{loss_backbone_train_forward.5} parent=15 // pred_check_branch
        %132 = sbr.rel (%p130) target = $region24
      $region23: #{loss_backbone_train_forward.5} parent=15 // pred_region
        %s133 = sadd.s32 %s15, %s16
        %p134 = scmp.lt.s32.totalorder %s133, 1
        %s135 = scalar_select %p134, %s133, 1
        %s136 = smul.addr %s135, 8
        %s137 = scalar_lea.vmem %s1, %s136
        %s138 = sadd.s32 %s15, %s16
      $region24: #{loss_backbone_train_forward.5} parent=15 // pred_fallthru
        _
    $region16: #{loss_backbone_train_forward.5} parent=5 // pred_fallthru
      _
    %p139 = scmp.le.s32.totalorder 1, %s8
    %p140 = scmp.lt.s32.totalorder %s8, 3
    %p141 = pnand %p139, %p140
    %p142 = pneg %p141
    // Predicated region
    $region25: #{loss_backbone_train_forward.5} parent=5 // pred_check
      _
    $region26: #{loss_backbone_train_forward.5} parent=5 // pred_check_branch
      %144 = sbr.rel (%p141) target = $region28
    $region27: #{loss_backbone_train_forward.5} parent=5 // pred_region
      %s145 = ssub.s32 %s8, 1
      %s146 = sadd.s32 %s17, %s18
      %p147 = scmp.lt.s32.totalorder %s146, 1
      %s148 = scalar_select %p147, %s146, 1
      %s149 = smul.addr %s148, 8
      %s150 = scalar_lea.vmem %s0, %s149
      %p151 = pneg %p48
      %p152 = pneg %p45
      %s153 = sadd.s32 %s17, %s18
      %p154 = scmp.lt.s32.totalorder %s153, 1
      %s155 = scalar_select %p154, %s153, 1
      %s156 = smul.addr %s155, 8
      %s157 = scalar_lea.vmem %s1, %s156
      %p158 = pneg %p76
      %p159 = pneg %p73
      %p160 = pneg %p102
      %p161 = pneg %p99
      %p162 = scmp.lt.s32.totalorder %s17, 1
      %s163 = scalar_select %p162, %s17, 1
      %s164 = smul.addr %s163, 8
      %s165 = scalar_lea.vmem %s2, %s164
      %s166 = sadd.s32 %s17, %s18
      %p167 = scmp.lt.s32.totalorder %s166, 1
      %s168 = scalar_select %p167, %s166, 1
      %s169 = smul.addr %s168, 8
      %s170 = scalar_lea.vmem %s0, %s169
      %s171 = sadd.s32 %s17, %s18
      %s172 = sadd.s32 %s17, %s18
      %p173 = scmp.lt.s32.totalorder %s172, 1
      %s174 = scalar_select %p173, %s172, 1
      %s175 = smul.addr %s174, 8
      %s176 = scalar_lea.vmem %s1, %s175
      %s177 = sadd.s32 %s17, %s18
      %p178 = scmp.lt.s32.totalorder %s17, 1
      %s179 = scalar_select %p178, %s17, 1
      %s180 = smul.addr %s179, 8
      %s181 = scalar_lea.vmem %s2, %s180
      %p182 = scmp.eq.s32.totalorder %s18, 0
      // Predicated region
      $region29: #{loss_backbone_train_forward.5} parent=27 // pred_check
        %p183 = pneg %p182
      $region30: #{loss_backbone_train_forward.5} parent=27 // pred_check_branch
        %185 = sbr.rel (%p183) target = $region32
      $region31: #{loss_backbone_train_forward.5} parent=27 // pred_region
        %186 = vst [vmem:[%s181] sm:$0xff] 0.0
      $region32: #{loss_backbone_train_forward.5} parent=27 // pred_fallthru
        _
      %v187 = vld [vmem:[%s170] sm:$0xff]
      %v188 = vld [vmem:[%s176] sm:$0xff]
      %v189 = vlog2.pop %v187
      %v190 = vmul.f32 %v189, 0.6931472
      %v191 = vmax.f32 %v190, -100.0
      %v192 = vsub.f32 1.0, %v187
      %v193 = vlog2.pop %v192
      %v194 = vmul.f32 %v193, 0.6931472
      %v195 = vmax.f32 %v194, -100.0
      %v196 = vsub.f32 %v191, %v195
      %v197 = vmul.f32 %v188, %v196
      %v198 = vadd.f32 %v195, %v197
      %v199 = vsub.f32 0.0, %v198
      %v200 = vld [vmem:[%s181] sm:$0xff]
      %v201 = vadd.f32 %v199, 0.0
      %v202 = vadd.f32 %v200, %v201
      %203 = vst [vmem:[%s181] sm:$0xff] %v202
      %p204 = scmp.lt.s32.totalorder %s17, 1
      %s205 = scalar_select %p204, %s17, 1
      %s206 = smul.addr %s205, 8
      %s207 = scalar_lea.vmem %s2, %s206
      // Predicated region
      $region33: #{loss_backbone_train_forward.5} parent=27 // pred_check
        %p208 = pneg %p99
      $region34: #{loss_backbone_train_forward.5} parent=27 // pred_check_branch
        %210 = sbr.rel (%p208) target = $region36
      $region35: #{loss_backbone_train_forward.5} parent=27 // pred_region
        _
      $region36: #{loss_backbone_train_forward.5} parent=27 // pred_fallthru
        _
    $region28: #{loss_backbone_train_forward.5} parent=5 // pred_fallthru
      _
    %p211 = scmp.le.s32.totalorder 2, %s8
    // Predicated region
    $region37: #{loss_backbone_train_forward.5} parent=5 // pred_check
      %p212 = pneg %p211
    $region38: #{loss_backbone_train_forward.5} parent=5 // pred_check_branch
      %214 = sbr.rel (%p212) target = $region40
    $region39: #{loss_backbone_train_forward.5} parent=5 // pred_region
      %s215 = ssub.s32 %s8, 2
      // Predicated region
      $region41: #{loss_backbone_train_forward.5} parent=39 // pred_check
        %p216 = pneg %p105
      $region42: #{loss_backbone_train_forward.5} parent=39 // pred_check_branch
        %218 = sbr.rel (%p216) target = $region44
      $region43: #{loss_backbone_train_forward.5} parent=39 // pred_region
        %p219 = scmp.lt.s32.totalorder %s19, 1
        %s220 = scalar_select %p219, %s19, 1
        %s221 = smul.addr %s220, 8
        %s222 = scalar_lea.vmem %s2, %s221
      $region44: #{loss_backbone_train_forward.5} parent=39 // pred_fallthru
        _
    $region40: #{loss_backbone_train_forward.5} parent=5 // pred_fallthru
      _
  $region6: #{loss_backbone_train_forward.5} parent=0 // loop_footer
    %s12 = sadd.s32 1, %s8
  $region7: #{loss_backbone_train_forward.5} parent=0 // loop_footer_branch
    %7 = sbr.rel target = $region3
  $region8: #{loss_backbone_train_forward.5} parent=0 // loop_exit
    _

// kernel: loss_backbone_train_forward.3
$region0: #{loss_backbone_train_forward.3}
  #allocation0 [shape = 'u32[]', space=smem, size = 0x4, offset = 0x4, fixed_abs, tag = 'smem constant byte address 0x4 - core index']
  #allocation1 [shape = 'u32[144,128]{1,0:T(1,128)}', space=vmem, size = 0x12000, scoped, tag = 'internal scratch']
  %s0 = inlined_call_operand.vmem [shape: f32[16,128], index: 0, kind: input, shape index: {}]
  %s1 = inlined_call_operand.vmem [shape: f32[16,128], index: 1, kind: input, shape index: {}]
  %s2 = inlined_call_operand.vmem [shape: f32[16,128], index: 2, kind: output, shape index: {}]
  %s3 = sld [smem:[#allocation0]]
  $region45: #{loss_backbone_train_forward.3} parent=0
    _
  %s5 = ssub.s32 1, %s3
  %s6 = scalar_select 0, %s5, %s3
  loop: start=0, step=1, limit=4
  $region2: #{loss_backbone_train_forward.3} parent=0 // loop_pre_header
    _
  $region3: #{loss_backbone_train_forward.3} parent=0 // loop_header
    %s8 = sphi 0, %s12
    %p9 = scmp.ge.s32.totalorder %s8, 4
    %s15 = sphi 0, %s27
    %s16 = sphi 0, %s23
    %s17 = sphi 0, %s15
    %s18 = sphi 0, %s16
    %s19 = sphi 0, %s17
    %s20 = sphi 0, %s18
    %s32 = sphi 0, %s34
    %s35 = sphi 0, %s32
    %s36 = sphi 0, %s35
    %s52 = sphi 0, %s36
    %s60 = sphi 0, %s62
    %s63 = sphi 0, %s60
    %s64 = sphi 0, %s63
    %s80 = sphi 0, %s64
    %s86 = sphi 0, %s88
    %s89 = sphi 0, %s86
    %s90 = sphi 0, %s89
    %s106 = sphi 0, %s90
  $region4: #{loss_backbone_train_forward.3} parent=0 // loop_header_branch
    %11 = sbr.rel (%p9) target = $region8
  $region5: #{loss_backbone_train_forward.3} parent=0 // loop_body
    %s13 = ssub.s32 %s8, 1
    %s14 = ssub.s32 %s8, 2
    %s21 = sadd.s32 1, %s16
    %p22 = scmp.ge.s32.totalorder %s21, 1
    %s23 = scalar_select %p22, 0, %s21
    %s24 = sadd.s32 1, %s15
    %s25 = scalar_select %p22, %s24, %s15
    %p26 = scmp.ge.s32.totalorder %s25, 2
    %s27 = scalar_select %p26, 0, %s25
    %s28 = sadd.s32 %s15, %s16
    %s29 = sadd.s32 %s27, %s23
    %s30 = ssub.s32 %s28, %s29
    %p31 = scmp.eq.s32.totalorder %s30, 0
    %s33 = sadd.s32 %s32, 1
    %s34 = scalar_select %p31, %s32, %s33
    %p37 = pneg %p31
    %p38 = scmp.eq.s32.totalorder %s8, 1
    %p39 = por %p37, %p38
    %p40 = scmp.ne.s32.totalorder %s32, %s35
    %p41 = scmp.eq.s32.totalorder %s8, 0
    %p42 = por %p40, %p41
    %p43 = scmp.ne.s32.totalorder %s32, %s35
    %p44 = scmp.eq.s32.totalorder %s13, 1
    %p45 = por %p43, %p44
    %p46 = scmp.ne.s32.totalorder %s35, %s36
    %p47 = scmp.eq.s32.totalorder %s13, 0
    %p48 = por %p46, %p47
    %p49 = scmp.ne.s32.totalorder %s35, %s36
    %p50 = scmp.eq.s32.totalorder %s14, 1
    %p51 = por %p49, %p50
    %p53 = scmp.ne.s32.totalorder %s36, %s52
    %p54 = scmp.eq.s32.totalorder %s14, 0
    %p55 = por %p53, %p54
    %s56 = sadd.s32 %s15, %s16
    %s57 = sadd.s32 %s27, %s23
    %s58 = ssub.s32 %s56, %s57
    %p59 = scmp.eq.s32.totalorder %s58, 0
    %s61 = sadd.s32 %s60, 1
    %s62 = scalar_select %p59, %s60, %s61
    %p65 = pneg %p59
    %p66 = scmp.eq.s32.totalorder %s8, 1
    %p67 = por %p65, %p66
    %p68 = scmp.ne.s32.totalorder %s60, %s63
    %p69 = scmp.eq.s32.totalorder %s8, 0
    %p70 = por %p68, %p69
    %p71 = scmp.ne.s32.totalorder %s60, %s63
    %p72 = scmp.eq.s32.totalorder %s13, 1
    %p73 = por %p71, %p72
    %p74 = scmp.ne.s32.totalorder %s63, %s64
    %p75 = scmp.eq.s32.totalorder %s13, 0
    %p76 = por %p74, %p75
    %p77 = scmp.ne.s32.totalorder %s63, %s64
    %p78 = scmp.eq.s32.totalorder %s14, 1
    %p79 = por %p77, %p78
    %p81 = scmp.ne.s32.totalorder %s64, %s80
    %p82 = scmp.eq.s32.totalorder %s14, 0
    %p83 = por %p81, %p82
    %s84 = ssub.s32 %s15, %s27
    %p85 = scmp.eq.s32.totalorder %s84, 0
    %s87 = sadd.s32 %s86, 1
    %s88 = scalar_select %p85, %s86, %s87
    %p91 = pneg %p85
    %p92 = scmp.eq.s32.totalorder %s8, 1
    %p93 = por %p91, %p92
    %p94 = scmp.ne.s32.totalorder %s86, %s89
    %p95 = scmp.eq.s32.totalorder %s8, 0
    %p96 = por %p94, %p95
    %p97 = scmp.ne.s32.totalorder %s86, %s89
    %p98 = scmp.eq.s32.totalorder %s13, 1
    %p99 = por %p97, %p98
    %p100 = scmp.ne.s32.totalorder %s89, %s90
    %p101 = scmp.eq.s32.totalorder %s13, 0
    %p102 = por %p100, %p101
    %p103 = scmp.ne.s32.totalorder %s89, %s90
    %p104 = scmp.eq.s32.totalorder %s14, 1
    %p105 = por %p103, %p104
    %p107 = scmp.ne.s32.totalorder %s90, %s106
    %p108 = scmp.eq.s32.totalorder %s14, 0
    %p109 = por %p107, %p108
    %p110 = scmp.le.s32.totalorder 1, %s8
    %p111 = scmp.lt.s32.totalorder %s8, 3
    %p112 = pnand %p110, %p111
    %p113 = pneg %p112
    // Predicated region
    $region9: #{loss_backbone_train_forward.3} parent=5 // pred_check
      _
    $region10: #{loss_backbone_train_forward.3} parent=5 // pred_check_branch
      %115 = sbr.rel (%p112) target = $region12
    $region11: #{loss_backbone_train_forward.3} parent=5 // pred_region
      %s116 = ssub.s32 %s8, 1
    $region12: #{loss_backbone_train_forward.3} parent=5 // pred_fallthru
      _
    %p117 = scmp.lt.s32.totalorder %s8, 2
    // Predicated region
    $region13: #{loss_backbone_train_forward.3} parent=5 // pred_check
      %p118 = pneg %p117
    $region14: #{loss_backbone_train_forward.3} parent=5 // pred_check_branch
      %120 = sbr.rel (%p118) target = $region16
    $region15: #{loss_backbone_train_forward.3} parent=5 // pred_region
      // Predicated region
      $region17: #{loss_backbone_train_forward.3} parent=15 // pred_check
        %p121 = pneg %p42
      $region18: #{loss_backbone_train_forward.3} parent=15 // pred_check_branch
        %123 = sbr.rel (%p121) target = $region20
      $region19: #{loss_backbone_train_forward.3} parent=15 // pred_region
        %s124 = sadd.s32 %s15, %s16
        %p125 = scmp.lt.s32.totalorder %s124, 1
        %s126 = scalar_select %p125, %s124, 1
        %s127 = smul.addr %s126, 8
        %s128 = scalar_lea.vmem %s0, %s127
        %s129 = sadd.s32 %s15, %s16
      $region20: #{loss_backbone_train_forward.3} parent=15 // pred_fallthru
        _
      // Predicated region
      $region21: #{loss_backbone_train_forward.3} parent=15 // pred_check
        %p130 = pneg %p70
      $region22: #{loss_backbone_train_forward.3} parent=15 // pred_check_branch
        %132 = sbr.rel (%p130) target = $region24
      $region23: #{loss_backbone_train_forward.3} parent=15 // pred_region
        %s133 = sadd.s32 %s15, %s16
        %p134 = scmp.lt.s32.totalorder %s133, 1
        %s135 = scalar_select %p134, %s133, 1
        %s136 = smul.addr %s135, 8
        %s137 = scalar_lea.vmem %s1, %s136
        %s138 = sadd.s32 %s15, %s16
      $region24: #{loss_backbone_train_forward.3} parent=15 // pred_fallthru
        _
    $region16: #{loss_backbone_train_forward.3} parent=5 // pred_fallthru
      _
    %p139 = scmp.le.s32.totalorder 1, %s8
    %p140 = scmp.lt.s32.totalorder %s8, 3
    %p141 = pnand %p139, %p140
    %p142 = pneg %p141
    // Predicated region
    $region25: #{loss_backbone_train_forward.3} parent=5 // pred_check
      _
    $region26: #{loss_backbone_train_forward.3} parent=5 // pred_check_branch
      %144 = sbr.rel (%p141) target = $region28
    $region27: #{loss_backbone_train_forward.3} parent=5 // pred_region
      %s145 = ssub.s32 %s8, 1
      %s146 = sadd.s32 %s17, %s18
      %p147 = scmp.lt.s32.totalorder %s146, 1
      %s148 = scalar_select %p147, %s146, 1
      %s149 = smul.addr %s148, 8
      %s150 = scalar_lea.vmem %s0, %s149
      %p151 = pneg %p48
      %p152 = pneg %p45
      %s153 = sadd.s32 %s17, %s18
      %p154 = scmp.lt.s32.totalorder %s153, 1
      %s155 = scalar_select %p154, %s153, 1
      %s156 = smul.addr %s155, 8
      %s157 = scalar_lea.vmem %s1, %s156
      %p158 = pneg %p76
      %p159 = pneg %p73
      %p160 = pneg %p102
      %p161 = pneg %p99
      %p162 = scmp.lt.s32.totalorder %s17, 1
      %s163 = scalar_select %p162, %s17, 1
      %s164 = smul.addr %s163, 8
      %s165 = scalar_lea.vmem %s2, %s164
      %s166 = sadd.s32 %s17, %s18
      %p167 = scmp.lt.s32.totalorder %s166, 1
      %s168 = scalar_select %p167, %s166, 1
      %s169 = smul.addr %s168, 8
      %s170 = scalar_lea.vmem %s0, %s169
      %s171 = sadd.s32 %s17, %s18
      %s172 = sadd.s32 %s17, %s18
      %p173 = scmp.lt.s32.totalorder %s172, 1
      %s174 = scalar_select %p173, %s172, 1
      %s175 = smul.addr %s174, 8
      %s176 = scalar_lea.vmem %s1, %s175
      %s177 = sadd.s32 %s17, %s18
      %p178 = scmp.lt.s32.totalorder %s17, 1
      %s179 = scalar_select %p178, %s17, 1
      %s180 = smul.addr %s179, 8
      %s181 = scalar_lea.vmem %s2, %s180
      %p182 = scmp.eq.s32.totalorder %s18, 0
      // Predicated region
      $region29: #{loss_backbone_train_forward.3} parent=27 // pred_check
        %p183 = pneg %p182
      $region30: #{loss_backbone_train_forward.3} parent=27 // pred_check_branch
        %185 = sbr.rel (%p183) target = $region32
      $region31: #{loss_backbone_train_forward.3} parent=27 // pred_region
        %186 = vst [vmem:[%s181] sm:$0xff] 0.0
      $region32: #{loss_backbone_train_forward.3} parent=27 // pred_fallthru
        _
      %v187 = vld [vmem:[%s170] sm:$0xff]
      %v188 = vld [vmem:[%s176] sm:$0xff]
      %v189 = vsub.f32 %v187, %v188
      %v190 = vand.u32 2147483647, %v189
      %v191 = vld [vmem:[%s181] sm:$0xff]
      %v192 = vadd.f32 %v190, 0.0
      %v193 = vadd.f32 %v191, %v192
      %194 = vst [vmem:[%s181] sm:$0xff] %v193
      %p195 = scmp.lt.s32.totalorder %s17, 1
      %s196 = scalar_select %p195, %s17, 1
      %s197 = smul.addr %s196, 8
      %s198 = scalar_lea.vmem %s2, %s197
      // Predicated region
      $region33: #{loss_backbone_train_forward.3} parent=27 // pred_check
        %p199 = pneg %p99
      $region34: #{loss_backbone_train_forward.3} parent=27 // pred_check_branch
        %201 = sbr.rel (%p199) target = $region36
      $region35: #{loss_backbone_train_forward.3} parent=27 // pred_region
        _
      $region36: #{loss_backbone_train_forward.3} parent=27 // pred_fallthru
        _
    $region28: #{loss_backbone_train_forward.3} parent=5 // pred_fallthru
      _
    %p202 = scmp.le.s32.totalorder 2, %s8
    // Predicated region
    $region37: #{loss_backbone_train_forward.3} parent=5 // pred_check
      %p203 = pneg %p202
    $region38: #{loss_backbone_train_forward.3} parent=5 // pred_check_branch
      %205 = sbr.rel (%p203) target = $region40
    $region39: #{loss_backbone_train_forward.3} parent=5 // pred_region
      %s206 = ssub.s32 %s8, 2
      // Predicated region
      $region41: #{loss_backbone_train_forward.3} parent=39 // pred_check
        %p207 = pneg %p105
      $region42: #{loss_backbone_train_forward.3} parent=39 // pred_check_branch
        %209 = sbr.rel (%p207) target = $region44
      $region43: #{loss_backbone_train_forward.3} parent=39 // pred_region
        %p210 = scmp.lt.s32.totalorder %s19, 1
        %s211 = scalar_select %p210, %s19, 1
        %s212 = smul.addr %s211, 8
        %s213 = scalar_lea.vmem %s2, %s212
      $region44: #{loss_backbone_train_forward.3} parent=39 // pred_fallthru
        _
    $region40: #{loss_backbone_train_forward.3} parent=5 // pred_fallthru
      _
  $region6: #{loss_backbone_train_forward.3} parent=0 // loop_footer
    %s12 = sadd.s32 1, %s8
  $region7: #{loss_backbone_train_forward.3} parent=0 // loop_footer_branch
    %7 = sbr.rel target = $region3
  $region8: #{loss_backbone_train_forward.3} parent=0 // loop_exit
    _

</llo_original>
